<compile_context>
chip_gen: v6e
topology: v6e:2x2x1
jax: 0.10.0
libtpu: 0.0.40
codegen_flags: <defaults>
</compile_context>

<pallas_src>
import functools

import jax
import jax.numpy as jnp
from jax.experimental import pallas as pl
from jax.experimental.pallas import tpu as pltpu


BN_EPS = 1e-5


def _round_up(x, m):
    return (x + m - 1) // m * m


def _padded_vmem_bytes(shape, itemsize):
    """Rough (sublane, lane)-padded VMEM footprint of one array."""
    if len(shape) == 0:
        r, c = 1, 1
    elif len(shape) == 1:
        r, c = 1, shape[0]
    else:
        r = 1
        for d in shape[:-1]:
            r *= int(d)
        c = shape[-1]
    sub = {4: 8, 2: 16, 1: 32}.get(itemsize, 8)
    return _round_up(max(int(r), 1), sub) * _round_up(max(int(c), 1), 128) * itemsize


def _make_decoder_kernel(num_mlp_layers):
    """Kernel with a fixed (trace-time) number of MLP layers.

    Refs (all whole-array in VMEM, no grid, all f32):
      zc_ref : (B, D)            input, zero-padded beyond d_in
      w_ref  : (L+1, D, D)       per-layer weight blocks, zero-padded; block L
                                 is the fused head [ I | Wm | Wv | 0 ]
      p_ref  : (2L+1, D)         rows 2i / 2i+1 = gamma_i / beta_i (zero-padded),
                                 last row = fused head bias [ 0 | bm | bv | 0 ]
      out_ref: (B, D)            = [ x | means | log_vars | zero padding ]

    Zero-padded feature columns stay exactly zero through every layer
    (gamma_pad = beta_pad = 0 => scale = shift = 0; relu(0) = tanh(0) = 0),
    so no in-kernel slicing / masking is needed.
    """
    L = num_mlp_layers

    def kernel(zc_ref, w_ref, p_ref, out_ref):
        h = zc_ref[...]                                   # (B, D) f32

        for i in range(L):
            # Linear WITHOUT bias (bias is cancelled exactly by the BN
            # batch-mean subtraction that immediately follows).
            h = jnp.dot(h, w_ref[i], preferred_element_type=jnp.float32)

            # BatchNorm1d (training mode, biased batch variance), centered
            # two-pass stats fused into one per-feature scale/shift.
            mean = jnp.mean(h, axis=0, keepdims=True)
            d = h - mean
            var = jnp.mean(d * d, axis=0, keepdims=True)
            gamma = p_ref[2 * i:2 * i + 1, :]
            beta = p_ref[2 * i + 1:2 * i + 2, :]
            scale = gamma * jax.lax.rsqrt(var + BN_EPS)   # EUP
            h = d * scale + beta                          # VPU

            # Activation: ReLU for hidden layers, Tanh on the last MLP layer.
            if i + 1 < L:
                h = jnp.maximum(h, 0.0)
            else:
                h = jnp.tanh(h)

        # Fused head: one matmul against [ I | Wm | Wv | 0 ] produces
        # [ x | means | log_vars | 0 ] -> single unmasked lane-dense store.
        out_ref[...] = (
            jnp.dot(h, w_ref[L], preferred_element_type=jnp.float32)
            + p_ref[2 * L:2 * L + 1, :]
        )

    return kernel


def _pack_params(params, d_in, latent, D):
    """Pack all decoder weights / small params into two pre-padded slabs."""
    L = len(params["mlp"])
    d_last = params["mlp"][-1][0].shape[1]

    # ---- weight slab: (L+1, D, D) ----
    w_blocks = []
    for (w, _b, _g, _bt) in params["mlp"]:
        r, c = w.shape
        blk = jnp.zeros((D, D), jnp.float32).at[:r, :c].set(w)
        w_blocks.append(blk)
    wm, bm = params["means"]
    wv, bv = params["log_var"]
    head = jnp.zeros((D, D), jnp.float32)
    head = head.at[:d_last, :d_last].set(jnp.eye(d_last, dtype=jnp.float32))
    head = head.at[:d_last, d_last:d_last + latent].set(wm)
    head = head.at[:d_last, d_last + latent:d_last + 2 * latent].set(wv)
    w_blocks.append(head)
    w_slab = jnp.stack(w_blocks, axis=0)

    # ---- small-param slab: (2L+1, D) ----
    p_rows = []
    for (_w, _b, g, bt) in params["mlp"]:
        c = g.shape[1]
        p_rows.append(jnp.zeros((1, D), jnp.float32).at[:, :c].set(g))
        p_rows.append(jnp.zeros((1, D), jnp.float32).at[:, :c].set(bt))
    bh = jnp.zeros((1, D), jnp.float32)
    bh = bh.at[:, d_last:d_last + latent].set(bm)
    bh = bh.at[:, d_last + latent:d_last + 2 * latent].set(bv)
    p_rows.append(bh)
    p_slab = jnp.concatenate(p_rows, axis=0)

    return w_slab, p_slab


def init_decoder_params(key, layer_sizes, latent_size, conditional,
                        conditional_size):
    """Deterministic parameter init (PyTorch-default-style uniform bounds)."""
    input_size = latent_size + conditional_size if conditional else latent_size
    params = {"mlp": []}
    dims = [input_size] + list(layer_sizes)
    for d_in, d_out in zip(dims[:-1], dims[1:]):
        key, kw, kb = jax.random.split(key, 3)
        bound = 1.0 / jnp.sqrt(d_in)
        w = jax.random.uniform(kw, (d_in, d_out), jnp.float32, -bound, bound)
        b = jax.random.uniform(kb, (1, d_out), jnp.float32, -bound, bound)
        gamma = jnp.ones((1, d_out), jnp.float32)
        beta = jnp.zeros((1, d_out), jnp.float32)
        params["mlp"].append((w, b, gamma, beta))
    d_last = layer_sizes[-1]
    for name in ("means", "log_var"):
        key, kw, kb = jax.random.split(key, 3)
        bound = 1.0 / jnp.sqrt(d_last)
        w = jax.random.uniform(kw, (d_last, latent_size), jnp.float32,
                               -bound, bound)
        b = jax.random.uniform(kb, (1, latent_size), jnp.float32,
                               -bound, bound)
        params[name] = (w, b)
    return params


@functools.partial(jax.jit, static_argnames=("conditional",))
def decoder_forward(z, c, params, conditional=True):
    # Glue (not the hot path): concat of z and conditional code.
    zc = jnp.concatenate([z, c], axis=-1) if conditional else z
    zc = zc.astype(jnp.float32)

    B, d_in = zc.shape
    L = len(params["mlp"])
    d_last = params["mlp"][-1][0].shape[1]
    latent = params["means"][0].shape[1]

    # Common padded feature width D (128-lane multiple) for every block; the
    # output slab [ x | means | log_vars | pad ] also has width D.
    widths = ([d_in]
              + [w.shape[1] for (w, _b, _g, _bt) in params["mlp"]]
              + [d_last + 2 * latent])
    D = _round_up(max(widths), 128)

    zc_pad = jnp.zeros((B, D), jnp.float32).at[:, :d_in].set(zc)
    w_slab, p_slab = _pack_params(params, d_in, latent, D)

    # Explicit VMEM budget: padded resident inputs/outputs + activation
    # headroom, doubled for pipelining buffers; cap at 48 MiB so the request
    # is also safe on v7x (64 MiB VMEM per TensorCore).
    needed = (_padded_vmem_bytes((B, D), 4)
              + _padded_vmem_bytes((L + 1, D, D), 4)
              + _padded_vmem_bytes((2 * L + 1, D), 4)
              + _padded_vmem_bytes((B, D), 4)
              + 4 * _padded_vmem_bytes((B, D), 4))
    vmem_limit = int(min(max(4 * needed, 4 << 20), 48 << 20))

    vmem = pl.BlockSpec(memory_space=pltpu.MemorySpace.VMEM)
    slab = pl.pallas_call(
        _make_decoder_kernel(L),
        out_shape=jax.ShapeDtypeStruct((B, D), jnp.float32),
        in_specs=[vmem, vmem, vmem],
        out_specs=vmem,
        compiler_params=pltpu.CompilerParams(vmem_limit_bytes=vmem_limit),
    )(zc_pad, w_slab, p_slab)

    x = slab[:, :d_last]
    means = slab[:, d_last:d_last + latent]
    log_vars = slab[:, d_last + latent:d_last + 2 * latent]
    return x, means, log_vars


def decoder_forward_ref(z, c, params, conditional=True):
    """Pure-JAX, f32, PyTorch-faithful reference (with Linear biases)."""
    h = jnp.concatenate([z, c], axis=-1) if conditional else z
    n = len(params["mlp"])
    for i, (w, b, g, bt) in enumerate(params["mlp"]):
        h = h @ w + b
        mean = jnp.mean(h, axis=0, keepdims=True)
        var = jnp.mean((h - mean) ** 2, axis=0, keepdims=True)
        h = (h - mean) / jnp.sqrt(var + BN_EPS) * g + bt
        h = jnp.maximum(h, 0.0) if i + 1 < n else jnp.tanh(h)
    wm, bm = params["means"]
    wv, bv = params["log_var"]
    return h, h @ wm + bm, h @ wv + bv


if __name__ == "__main__":
    # Small config consistent with the module:
    #   layer_sizes=[32, 16], latent_size=8, conditional=True, conditional_size=4
    layer_sizes = [32, 16]
    latent_size = 8
    conditional = True
    conditional_size = 4
    batch = 8

    key = jax.random.PRNGKey(0)
    kparams, kz, kc = jax.random.split(key, 3)

    params = init_decoder_params(kparams, layer_sizes, latent_size,
                                 conditional, conditional_size)
    z = jax.random.normal(kz, (batch, latent_size), jnp.float32)
    c = jax.random.normal(kc, (batch, conditional_size), jnp.float32)

    x_r, m_r, lv_r = decoder_forward_ref(z, c, params, conditional=conditional)

    x, means, log_vars = decoder_forward(z, c, params, conditional=conditional)
    jax.block_until_ready((x, means, log_vars))

    assert x.shape == (batch, layer_sizes[-1])
    assert means.shape == (batch, latent_size)
    assert log_vars.shape == (batch, latent_size)
    # Only differences vs. the reference are exact algebraic rewrites
    # (Linear-bias cancellation under training-mode BN, fused scale/shift,
    # identity pass-through of x in the fused head matmul).
    assert jnp.allclose(x, x_r, atol=5e-4, rtol=5e-4)
    assert jnp.allclose(means, m_r, atol=5e-4, rtol=5e-4)
    assert jnp.allclose(log_vars, lv_r, atol=5e-4, rtol=5e-4)

    print("KERNEL_OK")
</pallas_src>

<mosaic_0001>
module attributes {stable_mosaic.version = 11 : i64} {
  func.func @kernel(%arg0: memref<8x128xf32, #tpu.memory_space<vmem>>, %arg1: memref<3x128x128xf32, #tpu.memory_space<vmem>>, %arg2: memref<5x128xf32, #tpu.memory_space<vmem>>, %arg3: memref<8x128xf32, #tpu.memory_space<vmem>>) attributes {dimension_semantics = [], scalar_prefetch = 0 : i64, scratch_operands = 0 : i64, tpu.core_type = #tpu.core_type<tc>} {
    %c0 = arith.constant 0 : index
    %c0_0 = arith.constant 0 : index
    %0 = vector.load %arg0[%c0, %c0_0] : memref<8x128xf32, #tpu.memory_space<vmem>>, vector<8x128xf32>
    %c0_1 = arith.constant 0 : index
    %c0_2 = arith.constant 0 : index
    %c0_3 = arith.constant 0 : index
    %1 = vector.load %arg1[%c0_1, %c0_2, %c0_3] : memref<3x128x128xf32, #tpu.memory_space<vmem>>, vector<1x128x128xf32>
    %2 = vector.shape_cast %1 : vector<1x128x128xf32> to vector<128x128xf32>
    %cst = arith.constant dense<0.000000e+00> : vector<8x128xf32>
    %3 = tpu.matmul %0, %2, %cst {dimension_numbers = #tpu.dot_dimension_numbers<[1], [0], [0], [1], [0, 0, 1, 1], [], []>} : vector<8x128xf32>, vector<128x128xf32>, vector<8x128xf32> -> vector<8x128xf32>
    %cst_4 = arith.constant dense<0.000000e+00> : vector<128xf32>
    %4 = vector.multi_reduction <add>, %3, %cst_4 [0] : vector<8x128xf32> to vector<128xf32>
    %5 = vector.shape_cast %4 : vector<128xf32> to vector<1x128xf32>
    %cst_5 = arith.constant 8.000000e+00 : f32
    %6 = vector.broadcast %cst_5 : f32 to vector<1x128xf32>
    %7 = arith.divf %5, %6 : vector<1x128xf32>
    %8 = vector.broadcast %7 : vector<1x128xf32> to vector<8x128xf32>
    %9 = arith.subf %3, %8 : vector<8x128xf32>
    %10 = arith.mulf %9, %9 : vector<8x128xf32>
    %cst_6 = arith.constant dense<0.000000e+00> : vector<128xf32>
    %11 = vector.multi_reduction <add>, %10, %cst_6 [0] : vector<8x128xf32> to vector<128xf32>
    %12 = vector.shape_cast %11 : vector<128xf32> to vector<1x128xf32>
    %cst_7 = arith.constant 8.000000e+00 : f32
    %13 = vector.broadcast %cst_7 : f32 to vector<1x128xf32>
    %14 = arith.divf %12, %13 : vector<1x128xf32>
    %c0_8 = arith.constant 0 : index
    %c0_9 = arith.constant 0 : index
    %15 = vector.load %arg2[%c0_8, %c0_9] : memref<5x128xf32, #tpu.memory_space<vmem>>, vector<1x128xf32>
    %c1 = arith.constant 1 : index
    %c0_10 = arith.constant 0 : index
    %16 = vector.load %arg2[%c1, %c0_10] : memref<5x128xf32, #tpu.memory_space<vmem>>, vector<1x128xf32>
    %cst_11 = arith.constant 9.99999974E-6 : f32
    %17 = vector.broadcast %cst_11 : f32 to vector<1x128xf32>
    %18 = arith.addf %14, %17 : vector<1x128xf32>
    %19 = math.rsqrt %18 : vector<1x128xf32>
    %20 = arith.mulf %15, %19 : vector<1x128xf32>
    %21 = vector.broadcast %20 : vector<1x128xf32> to vector<8x128xf32>
    %22 = arith.mulf %9, %21 : vector<8x128xf32>
    %23 = vector.broadcast %16 : vector<1x128xf32> to vector<8x128xf32>
    %24 = arith.addf %22, %23 : vector<8x128xf32>
    %cst_12 = arith.constant 0.000000e+00 : f32
    %25 = vector.broadcast %cst_12 : f32 to vector<8x128xf32>
    %26 = arith.maximumf %24, %25 : vector<8x128xf32>
    %c1_13 = arith.constant 1 : index
    %c0_14 = arith.constant 0 : index
    %c0_15 = arith.constant 0 : index
    %27 = vector.load %arg1[%c1_13, %c0_14, %c0_15] : memref<3x128x128xf32, #tpu.memory_space<vmem>>, vector<1x128x128xf32>
    %28 = vector.shape_cast %27 : vector<1x128x128xf32> to vector<128x128xf32>
    %cst_16 = arith.constant dense<0.000000e+00> : vector<8x128xf32>
    %29 = tpu.matmul %26, %28, %cst_16 {dimension_numbers = #tpu.dot_dimension_numbers<[1], [0], [0], [1], [0, 0, 1, 1], [], []>} : vector<8x128xf32>, vector<128x128xf32>, vector<8x128xf32> -> vector<8x128xf32>
    %cst_17 = arith.constant dense<0.000000e+00> : vector<128xf32>
    %30 = vector.multi_reduction <add>, %29, %cst_17 [0] : vector<8x128xf32> to vector<128xf32>
    %31 = vector.shape_cast %30 : vector<128xf32> to vector<1x128xf32>
    %cst_18 = arith.constant 8.000000e+00 : f32
    %32 = vector.broadcast %cst_18 : f32 to vector<1x128xf32>
    %33 = arith.divf %31, %32 : vector<1x128xf32>
    %34 = vector.broadcast %33 : vector<1x128xf32> to vector<8x128xf32>
    %35 = arith.subf %29, %34 : vector<8x128xf32>
    %36 = arith.mulf %35, %35 : vector<8x128xf32>
    %cst_19 = arith.constant dense<0.000000e+00> : vector<128xf32>
    %37 = vector.multi_reduction <add>, %36, %cst_19 [0] : vector<8x128xf32> to vector<128xf32>
    %38 = vector.shape_cast %37 : vector<128xf32> to vector<1x128xf32>
    %cst_20 = arith.constant 8.000000e+00 : f32
    %39 = vector.broadcast %cst_20 : f32 to vector<1x128xf32>
    %40 = arith.divf %38, %39 : vector<1x128xf32>
    %c2 = arith.constant 2 : index
    %c0_21 = arith.constant 0 : index
    %41 = vector.load %arg2[%c2, %c0_21] : memref<5x128xf32, #tpu.memory_space<vmem>>, vector<1x128xf32>
    %c3 = arith.constant 3 : index
    %c0_22 = arith.constant 0 : index
    %42 = vector.load %arg2[%c3, %c0_22] : memref<5x128xf32, #tpu.memory_space<vmem>>, vector<1x128xf32>
    %cst_23 = arith.constant 9.99999974E-6 : f32
    %43 = vector.broadcast %cst_23 : f32 to vector<1x128xf32>
    %44 = arith.addf %40, %43 : vector<1x128xf32>
    %45 = math.rsqrt %44 : vector<1x128xf32>
    %46 = arith.mulf %41, %45 : vector<1x128xf32>
    %47 = vector.broadcast %46 : vector<1x128xf32> to vector<8x128xf32>
    %48 = arith.mulf %35, %47 : vector<8x128xf32>
    %49 = vector.broadcast %42 : vector<1x128xf32> to vector<8x128xf32>
    %50 = arith.addf %48, %49 : vector<8x128xf32>
    %51 = math.tanh %50 : vector<8x128xf32>
    %c2_24 = arith.constant 2 : index
    %c0_25 = arith.constant 0 : index
    %c0_26 = arith.constant 0 : index
    %52 = vector.load %arg1[%c2_24, %c0_25, %c0_26] : memref<3x128x128xf32, #tpu.memory_space<vmem>>, vector<1x128x128xf32>
    %53 = vector.shape_cast %52 : vector<1x128x128xf32> to vector<128x128xf32>
    %cst_27 = arith.constant dense<0.000000e+00> : vector<8x128xf32>
    %54 = tpu.matmul %51, %53, %cst_27 {dimension_numbers = #tpu.dot_dimension_numbers<[1], [0], [0], [1], [0, 0, 1, 1], [], []>} : vector<8x128xf32>, vector<128x128xf32>, vector<8x128xf32> -> vector<8x128xf32>
    %c4 = arith.constant 4 : index
    %c0_28 = arith.constant 0 : index
    %55 = vector.load %arg2[%c4, %c0_28] : memref<5x128xf32, #tpu.memory_space<vmem>>, vector<1x128xf32>
    %56 = vector.broadcast %55 : vector<1x128xf32> to vector<8x128xf32>
    %57 = arith.addf %54, %56 : vector<8x128xf32>
    %c0_29 = arith.constant 0 : index
    %c0_30 = arith.constant 0 : index
    %58 = vector.load %arg3[%c0_29, %c0_30] : memref<8x128xf32, #tpu.memory_space<vmem>>, vector<8x128xf32>
    tpu.vector_store %arg3[%c0_29, %c0_30], %57 {strides = array<i32>} : memref<8x128xf32, #tpu.memory_space<vmem>>, vector<8x128xf32>,
    return
  }
}

</mosaic_0001>

<llo_original>
// kernel: decoder_forward.1
$region0: #{decoder_forward.1}
  #allocation0 [shape = 'u32[]', space=smem, size = 0x4, offset = 0x4, fixed_abs, tag = 'smem constant byte address 0x4 - core index']
  #allocation1 [shape = 'u32[144,128]{1,0:T(1,128)}', space=vmem, size = 0x12000, scoped, tag = 'internal scratch']
  %s0 = inlined_call_operand.vmem [shape: f32[8,128], index: 0, kind: input, shape index: {}]
  %s1 = inlined_call_operand.vmem [shape: f32[3,128,128], index: 1, kind: input, shape index: {}]
  %s2 = inlined_call_operand.vmem [shape: f32[5,128], index: 2, kind: input, shape index: {}]
  %s3 = inlined_call_operand.vmem [shape: f32[8,128], index: 3, kind: output, shape index: {}]
  %s4 = sld [smem:[#allocation0]]
  $region22: #{decoder_forward.1} parent=0
    _
  %s6 = ssub.s32 1, %s4
  %s7 = scalar_select 0, %s6, %s4
  // Predicated region
  $region2: #{decoder_forward.1} parent=0 // pred_check
    _
  $region3: #{decoder_forward.1} parent=0 // pred_check_branch
    %9 = sbr.rel (0) target = $region5
  $region4: #{decoder_forward.1} parent=0 // pred_region
    _
  $region5: #{decoder_forward.1} parent=0 // pred_fallthru
    _
  // Predicated region
  $region6: #{decoder_forward.1} parent=0 // pred_check
    _
  $region7: #{decoder_forward.1} parent=0 // pred_check_branch
    %11 = sbr.rel (0) target = $region9
  $region8: #{decoder_forward.1} parent=0 // pred_region
    _
  $region9: #{decoder_forward.1} parent=0 // pred_fallthru
    _
  // Predicated region
  $region10: #{decoder_forward.1} parent=0 // pred_check
    _
  $region11: #{decoder_forward.1} parent=0 // pred_check_branch
    %13 = sbr.rel (0) target = $region13
  $region12: #{decoder_forward.1} parent=0 // pred_region
    _
  $region13: #{decoder_forward.1} parent=0 // pred_fallthru
    _
  %v14 = vld [vmem:[%s0] sm:$0xff]
  %v15 = vld [vmem:[%s1] sm:$0xff]
  %v16 = vld [vmem:[%s1 + $0x8] sm:$0xff]
  %v17 = vld [vmem:[%s1 + $0x10] sm:$0xff]
  %v18 = vld [vmem:[%s1 + $0x18] sm:$0xff]
  %v19 = vld [vmem:[%s1 + $0x20] sm:$0xff]
  %v20 = vld [vmem:[%s1 + $0x28] sm:$0xff]
  %v21 = vld [vmem:[%s1 + $0x30] sm:$0xff]
  %v22 = vld [vmem:[%s1 + $0x38] sm:$0xff]
  %v23 = vld [vmem:[%s1 + $0x40] sm:$0xff]
  %v24 = vld [vmem:[%s1 + $0x48] sm:$0xff]
  %v25 = vld [vmem:[%s1 + $0x50] sm:$0xff]
  %v26 = vld [vmem:[%s1 + $0x58] sm:$0xff]
  %v27 = vld [vmem:[%s1 + $0x60] sm:$0xff]
  %v28 = vld [vmem:[%s1 + $0x68] sm:$0xff]
  %v29 = vld [vmem:[%s1 + $0x70] sm:$0xff]
  %v30 = vld [vmem:[%s1 + $0x78] sm:$0xff]
  %31 = vmatprep.subr.mxu0 0.0
  %32 = vmatpush1.msra.mxu0 %v30
  %33 = vmatprep.subr.mxu0 0.0
  %34 = vmatpush1.msra.mxu0 %v29
  %35 = vmatprep.subr.mxu0 0.0
  %36 = vmatpush1.msra.mxu0 %v28
  %37 = vmatprep.subr.mxu0 0.0
  %38 = vmatpush1.msra.mxu0 %v27
  %39 = vmatprep.subr.mxu0 0.0
  %40 = vmatpush1.msra.mxu0 %v26
  %41 = vmatprep.subr.mxu0 0.0
  %42 = vmatpush1.msra.mxu0 %v25
  %43 = vmatprep.subr.mxu0 0.0
  %44 = vmatpush1.msra.mxu0 %v24
  %45 = vmatprep.subr.mxu0 0.0
  %46 = vmatpush1.msra.mxu0 %v23
  %47 = vmatprep.subr.mxu0 0.0
  %48 = vmatpush1.msra.mxu0 %v22
  %49 = vmatprep.subr.mxu0 0.0
  %50 = vmatpush1.msra.mxu0 %v21
  %51 = vmatprep.subr.mxu0 0.0
  %52 = vmatpush1.msra.mxu0 %v20
  %53 = vmatprep.subr.mxu0 0.0
  %54 = vmatpush1.msra.mxu0 %v19
  %55 = vmatprep.subr.mxu0 0.0
  %56 = vmatpush1.msra.mxu0 %v18
  %57 = vmatprep.subr.mxu0 0.0
  %58 = vmatpush1.msra.mxu0 %v17
  %59 = vmatprep.subr.mxu0 0.0
  %60 = vmatpush1.msra.mxu0 %v16
  %61 = vmatprep.subr.mxu0 0.0
  %62 = vmatpush1.msra.mxu0 %v15
  %63 = vmatprep.subr.mxu0 0.0
  %64 = vmatpush2.msra.mxu0 0.0
  %65 = vmatprep.subr.mxu0 0.0
  %66 = vmatpush2.msra.mxu0 0.0
  %67 = vmatprep.subr.mxu0 0.0
  %68 = vmatpush2.msra.mxu0 0.0
  %69 = vmatprep.subr.mxu0 0.0
  %70 = vmatpush2.msra.mxu0 0.0
  %71 = vmatprep.subr.mxu0 0.0
  %72 = vmatpush2.msra.mxu0 0.0
  %73 = vmatprep.subr.mxu0 0.0
  %74 = vmatpush2.msra.mxu0 0.0
  %75 = vmatprep.subr.mxu0 0.0
  %76 = vmatpush2.msra.mxu0 0.0
  %77 = vmatprep.subr.mxu0 0.0
  %78 = vmatpush2.msra.mxu0 0.0
  %79 = vmatprep.subr.mxu0 0.0
  %80 = vmatpush2.msra.mxu0 0.0
  %81 = vmatprep.subr.mxu0 0.0
  %82 = vmatpush2.msra.mxu0 0.0
  %83 = vmatprep.subr.mxu0 0.0
  %84 = vmatpush2.msra.mxu0 0.0
  %85 = vmatprep.subr.mxu0 0.0
  %86 = vmatpush2.msra.mxu0 0.0
  %87 = vmatprep.subr.mxu0 0.0
  %88 = vmatpush2.msra.mxu0 0.0
  %89 = vmatprep.subr.mxu0 0.0
  %90 = vmatpush2.msra.mxu0 0.0
  %91 = vmatprep.subr.mxu0 0.0
  %92 = vmatpush2.msra.mxu0 0.0
  %93 = vmatprep.subr.mxu0 0.0
  %94 = vmatpush2.msra.mxu0 0.0
  %95 = vmatprep.mubr.f32.mxu0 0.0
  %96 = vmatmul.mubr.f32.gmra.mxu0 %v14
  %v97 = vpop.f32.mrf.mxu0
  %v98 = vadd.f32 0.0, %v97
  %v99 = vpop.f32.mrf.mxu0
  %100 = vdwg.mxu0
  %v101 = vrot.slane %v98, 4
  %v102 = vadd.f32 %v98, %v101
  %v103 = vrot.slane %v102, 2
  %v104 = vadd.f32 %v102, %v103
  %v105 = vrot.slane %v104, 1
  %v106 = vadd.f32 %v104, %v105
  %v107 = vrcp.pop 8.0
  %v108 = vmul.f32 %v106, %v107
  %v109 = vsub.f32 %v98, %v108
  %v110 = vmul.f32 %v109, %v109
  %v111 = vrot.slane %v110, 4
  %v112 = vadd.f32 %v110, %v111
  %v113 = vrot.slane %v112, 2
  %v114 = vadd.f32 %v112, %v113
  %v115 = vrot.slane %v114, 1
  %v116 = vadd.f32 %v114, %v115
  %v117 = vmul.f32 %v116, %v107
  %v118 = vld [vmem:[%s2] sm:$0x1]
  %v119 = vld [vmem:[%s2 + $0x1] sm:$0x1]
  %v120 = vadd.f32 %v117, 1e-05
  %v121 = vrsqrt.pop %v120
  %v122 = vmul.f32 %v118, %v121
  %v123 = vlaneseq
  %v124 = vshrl.u32 %v123, 7
  %v125 = vsub.s32 0, %v124
  %v126 = vrot.slane %v122, %v125
  %v127 = vmul.f32 %v109, %v126
  %v128 = vlaneseq
  %v129 = vshrl.u32 %v128, 7
  %v130 = vsub.s32 0, %v129
  %v131 = vrot.slane %v119, %v130
  %v132 = vadd.f32 %v127, %v131
  %v133 = vmax.f32 %v132, 0.0
  %s134 = scalar_lea.vmem %s1, 128
  %v135 = vld [vmem:[%s134] sm:$0xff]
  %v136 = vld [vmem:[%s134 + $0x8] sm:$0xff]
  %v137 = vld [vmem:[%s134 + $0x10] sm:$0xff]
  %v138 = vld [vmem:[%s134 + $0x18] sm:$0xff]
  %v139 = vld [vmem:[%s134 + $0x20] sm:$0xff]
  %v140 = vld [vmem:[%s134 + $0x28] sm:$0xff]
  %v141 = vld [vmem:[%s134 + $0x30] sm:$0xff]
  %v142 = vld [vmem:[%s134 + $0x38] sm:$0xff]
  %v143 = vld [vmem:[%s134 + $0x40] sm:$0xff]
  %v144 = vld [vmem:[%s134 + $0x48] sm:$0xff]
  %v145 = vld [vmem:[%s134 + $0x50] sm:$0xff]
  %v146 = vld [vmem:[%s134 + $0x58] sm:$0xff]
  %v147 = vld [vmem:[%s134 + $0x60] sm:$0xff]
  %v148 = vld [vmem:[%s134 + $0x68] sm:$0xff]
  %v149 = vld [vmem:[%s134 + $0x70] sm:$0xff]
  %v150 = vld [vmem:[%s134 + $0x78] sm:$0xff]
  %151 = vmatprep.subr.mxu0 0.0
  %152 = vmatpush1.msra.mxu0 %v150
  %153 = vmatprep.subr.mxu0 0.0
  %154 = vmatpush1.msra.mxu0 %v149
  %155 = vmatprep.subr.mxu0 0.0
  %156 = vmatpush1.msra.mxu0 %v148
  %157 = vmatprep.subr.mxu0 0.0
  %158 = vmatpush1.msra.mxu0 %v147
  %159 = vmatprep.subr.mxu0 0.0
  %160 = vmatpush1.msra.mxu0 %v146
  %161 = vmatprep.subr.mxu0 0.0
  %162 = vmatpush1.msra.mxu0 %v145
  %163 = vmatprep.subr.mxu0 0.0
  %164 = vmatpush1.msra.mxu0 %v144
  %165 = vmatprep.subr.mxu0 0.0
  %166 = vmatpush1.msra.mxu0 %v143
  %167 = vmatprep.subr.mxu0 0.0
  %168 = vmatpush1.msra.mxu0 %v142
  %169 = vmatprep.subr.mxu0 0.0
  %170 = vmatpush1.msra.mxu0 %v141
  %171 = vmatprep.subr.mxu0 0.0
  %172 = vmatpush1.msra.mxu0 %v140
  %173 = vmatprep.subr.mxu0 0.0
  %174 = vmatpush1.msra.mxu0 %v139
  %175 = vmatprep.subr.mxu0 0.0
  %176 = vmatpush1.msra.mxu0 %v138
  %177 = vmatprep.subr.mxu0 0.0
  %178 = vmatpush1.msra.mxu0 %v137
  %179 = vmatprep.subr.mxu0 0.0
  %180 = vmatpush1.msra.mxu0 %v136
  %181 = vmatprep.subr.mxu0 0.0
  %182 = vmatpush1.msra.mxu0 %v135
  %183 = vmatprep.subr.mxu0 0.0
  %184 = vmatpush2.msra.mxu0 0.0
  %185 = vmatprep.subr.mxu0 0.0
  %186 = vmatpush2.msra.mxu0 0.0
  %187 = vmatprep.subr.mxu0 0.0
  %188 = vmatpush2.msra.mxu0 0.0
  %189 = vmatprep.subr.mxu0 0.0
  %190 = vmatpush2.msra.mxu0 0.0
  %191 = vmatprep.subr.mxu0 0.0
  %192 = vmatpush2.msra.mxu0 0.0
  %193 = vmatprep.subr.mxu0 0.0
  %194 = vmatpush2.msra.mxu0 0.0
  %195 = vmatprep.subr.mxu0 0.0
  %196 = vmatpush2.msra.mxu0 0.0
  %197 = vmatprep.subr.mxu0 0.0
  %198 = vmatpush2.msra.mxu0 0.0
  %199 = vmatprep.subr.mxu0 0.0
  %200 = vmatpush2.msra.mxu0 0.0
  %201 = vmatprep.subr.mxu0 0.0
  %202 = vmatpush2.msra.mxu0 0.0
  %203 = vmatprep.subr.mxu0 0.0
  %204 = vmatpush2.msra.mxu0 0.0
  %205 = vmatprep.subr.mxu0 0.0
  %206 = vmatpush2.msra.mxu0 0.0
  %207 = vmatprep.subr.mxu0 0.0
  %208 = vmatpush2.msra.mxu0 0.0
  %209 = vmatprep.subr.mxu0 0.0
  %210 = vmatpush2.msra.mxu0 0.0
  %211 = vmatprep.subr.mxu0 0.0
  %212 = vmatpush2.msra.mxu0 0.0
  %213 = vmatprep.subr.mxu0 0.0
  %214 = vmatpush2.msra.mxu0 0.0
  %215 = vmatprep.mubr.f32.mxu0 0.0
  %216 = vmatmul.mubr.f32.gmra.mxu0 %v133
  %v217 = vpop.f32.mrf.mxu0
  %v218 = vadd.f32 0.0, %v217
  %v219 = vpop.f32.mrf.mxu0
  %220 = vdwg.mxu0
  %v221 = vrot.slane %v218, 4
  %v222 = vadd.f32 %v218, %v221
  %v223 = vrot.slane %v222, 2
  %v224 = vadd.f32 %v222, %v223
  %v225 = vrot.slane %v224, 1
  %v226 = vadd.f32 %v224, %v225
  %v227 = vmul.f32 %v226, %v107
  %v228 = vsub.f32 %v218, %v227
  %v229 = vmul.f32 %v228, %v228
  %v230 = vrot.slane %v229, 4
  %v231 = vadd.f32 %v229, %v230
  %v232 = vrot.slane %v231, 2
  %v233 = vadd.f32 %v231, %v232
  %v234 = vrot.slane %v233, 1
  %v235 = vadd.f32 %v233, %v234
  %v236 = vmul.f32 %v235, %v107
  %v237 = vld [vmem:[%s2 + $0x2] sm:$0x1]
  %v238 = vld [vmem:[%s2 + $0x3] sm:$0x1]
  %v239 = vadd.f32 %v236, 1e-05
  %v240 = vrsqrt.pop %v239
  %v241 = vmul.f32 %v237, %v240
  %v242 = vlaneseq
  %v243 = vshrl.u32 %v242, 7
  %v244 = vsub.s32 0, %v243
  %v245 = vrot.slane %v241, %v244
  %v246 = vmul.f32 %v228, %v245
  %v247 = vlaneseq
  %v248 = vshrl.u32 %v247, 7
  %v249 = vsub.s32 0, %v248
  %v250 = vrot.slane %v238, %v249
  %v251 = vadd.f32 %v246, %v250
  %v252 = vtanh.pop %v251
  %s253 = scalar_lea.vmem %s1, 256
  %v254 = vld [vmem:[%s253] sm:$0xff]
  %v255 = vld [vmem:[%s253 + $0x8] sm:$0xff]
  %v256 = vld [vmem:[%s253 + $0x10] sm:$0xff]
  %v257 = vld [vmem:[%s253 + $0x18] sm:$0xff]
  %v258 = vld [vmem:[%s253 + $0x20] sm:$0xff]
  %v259 = vld [vmem:[%s253 + $0x28] sm:$0xff]
  %v260 = vld [vmem:[%s253 + $0x30] sm:$0xff]
  %v261 = vld [vmem:[%s253 + $0x38] sm:$0xff]
  %v262 = vld [vmem:[%s253 + $0x40] sm:$0xff]
  %v263 = vld [vmem:[%s253 + $0x48] sm:$0xff]
  %v264 = vld [vmem:[%s253 + $0x50] sm:$0xff]
  %v265 = vld [vmem:[%s253 + $0x58] sm:$0xff]
  %v266 = vld [vmem:[%s253 + $0x60] sm:$0xff]
  %v267 = vld [vmem:[%s253 + $0x68] sm:$0xff]
  %v268 = vld [vmem:[%s253 + $0x70] sm:$0xff]
  %v269 = vld [vmem:[%s253 + $0x78] sm:$0xff]
  %v270 = vld [vmem:[%s2 + $0x4] sm:$0x1]
  %v271 = vlaneseq
  %v272 = vshrl.u32 %v271, 7
  %v273 = vsub.s32 0, %v272
  %v274 = vrot.slane %v270, %v273
  %275 = vmatprep.subr.mxu0 0.0
  %276 = vmatpush1.msra.mxu0 %v269
  %277 = vmatprep.subr.mxu0 0.0
  %278 = vmatpush1.msra.mxu0 %v268
  %279 = vmatprep.subr.mxu0 0.0
  %280 = vmatpush1.msra.mxu0 %v267
  %281 = vmatprep.subr.mxu0 0.0
  %282 = vmatpush1.msra.mxu0 %v266
  %283 = vmatprep.subr.mxu0 0.0
  %284 = vmatpush1.msra.mxu0 %v265
  %285 = vmatprep.subr.mxu0 0.0
  %286 = vmatpush1.msra.mxu0 %v264
  %287 = vmatprep.subr.mxu0 0.0
  %288 = vmatpush1.msra.mxu0 %v263
  %289 = vmatprep.subr.mxu0 0.0
  %290 = vmatpush1.msra.mxu0 %v262
  %291 = vmatprep.subr.mxu0 0.0
  %292 = vmatpush1.msra.mxu0 %v261
  %293 = vmatprep.subr.mxu0 0.0
  %294 = vmatpush1.msra.mxu0 %v260
  %295 = vmatprep.subr.mxu0 0.0
  %296 = vmatpush1.msra.mxu0 %v259
  %297 = vmatprep.subr.mxu0 0.0
  %298 = vmatpush1.msra.mxu0 %v258
  %299 = vmatprep.subr.mxu0 0.0
  %300 = vmatpush1.msra.mxu0 %v257
  %301 = vmatprep.subr.mxu0 0.0
  %302 = vmatpush1.msra.mxu0 %v256
  %303 = vmatprep.subr.mxu0 0.0
  %304 = vmatpush1.msra.mxu0 %v255
  %305 = vmatprep.subr.mxu0 0.0
  %306 = vmatpush1.msra.mxu0 %v254
  %307 = vmatprep.subr.mxu0 0.0
  %308 = vmatpush2.msra.mxu0 0.0
  %309 = vmatprep.subr.mxu0 0.0
  %310 = vmatpush2.msra.mxu0 0.0
  %311 = vmatprep.subr.mxu0 0.0
  %312 = vmatpush2.msra.mxu0 0.0
  %313 = vmatprep.subr.mxu0 0.0
  %314 = vmatpush2.msra.mxu0 0.0
  %315 = vmatprep.subr.mxu0 0.0
  %316 = vmatpush2.msra.mxu0 0.0
  %317 = vmatprep.subr.mxu0 0.0
  %318 = vmatpush2.msra.mxu0 0.0
  %319 = vmatprep.subr.mxu0 0.0
  %320 = vmatpush2.msra.mxu0 0.0
  %321 = vmatprep.subr.mxu0 0.0
  %322 = vmatpush2.msra.mxu0 0.0
  %323 = vmatprep.subr.mxu0 0.0
  %324 = vmatpush2.msra.mxu0 0.0
  %325 = vmatprep.subr.mxu0 0.0
  %326 = vmatpush2.msra.mxu0 0.0
  %327 = vmatprep.subr.mxu0 0.0
  %328 = vmatpush2.msra.mxu0 0.0
  %329 = vmatprep.subr.mxu0 0.0
  %330 = vmatpush2.msra.mxu0 0.0
  %331 = vmatprep.subr.mxu0 0.0
  %332 = vmatpush2.msra.mxu0 0.0
  %333 = vmatprep.subr.mxu0 0.0
  %334 = vmatpush2.msra.mxu0 0.0
  %335 = vmatprep.subr.mxu0 0.0
  %336 = vmatpush2.msra.mxu0 0.0
  %337 = vmatprep.subr.mxu0 0.0
  %338 = vmatpush2.msra.mxu0 0.0
  %339 = vmatprep.mubr.f32.mxu0 0.0
  %340 = vmatmul.mubr.f32.gmra.mxu0 %v252
  %v341 = vpop.f32.mrf.mxu0
  %v342 = vadd.f32 %v274, %v341
  %v343 = vpop.f32.mrf.mxu0
  %344 = vdwg.mxu0
  %345 = vst [vmem:[%s3] sm:$0xff] %v342
  // Predicated region
  $region14: #{decoder_forward.1} parent=0 // pred_check
    _
  $region15: #{decoder_forward.1} parent=0 // pred_check_branch
    %347 = sbr.rel (0) target = $region17
  $region16: #{decoder_forward.1} parent=0 // pred_region
    _
  $region17: #{decoder_forward.1} parent=0 // pred_fallthru
    _
  // Predicated region
  $region18: #{decoder_forward.1} parent=0 // pred_check
    _
  $region19: #{decoder_forward.1} parent=0 // pred_check_branch
    %349 = sbr.rel (0) target = $region21
  $region20: #{decoder_forward.1} parent=0 // pred_region
    _
  $region21: #{decoder_forward.1} parent=0 // pred_fallthru
    _

</llo_original>
